<compile_context>
chip_gen: v5e
topology: v5e:2x2
jax: 0.10.0
libtpu: 0.0.40
codegen_flags: <defaults>
</compile_context>

<pallas_src>
import functools

import jax
import jax.numpy as jnp
from jax.experimental import pallas as pl
from jax.experimental.pallas import tpu as pltpu


def _group_broadcast_reduce(x, op, K, M):
    """Reduce (with `op`) over the K stride-M lane groups of a (TB, K*M) array
    and broadcast the result back to every lane, using XLU lane rotations.

    Group of movie m = columns {m, m + M, ..., m + (K-1)M}; since the lane
    extent is exactly K*M, any roll by a multiple of M stays inside the group.
    """
    if K <= 1:
        return x
    if (K & (K - 1)) == 0:
        # Power-of-two K: log2(K)-deep doubling tree.
        shift = M
        while shift < K * M:
            x = op(x, pltpu.roll(x, shift=shift, axis=1))
            shift *= 2
        return x
    # General K: K-1 rolls, each group member combined exactly once.
    acc = x
    for k in range(1, K):
        acc = op(acc, pltpu.roll(x, shift=k * M, axis=1))
    return acc


def _rbm_forward_kernel(v_ref, w1_ref, w2_ref, hb_ref, vb_ref, out_ref, *, K, M):
    """One batch tile of the RBM reconstruction.

    v_ref  : (TB, V) f32, flattened one-hot visible units, natural (M,K) order
    w1_ref : (V, H)  bf16, weights for v -> h, (M,K)-ordered rows (resident)
    w2_ref : (H, V)  bf16, weights for h -> v, (K,M)-ordered cols (resident)
    hb_ref : (1, H)  f32 hidden bias (resident)
    vb_ref : (1, V)  f32 visible bias, (K,M) order (resident)
    out_ref: (TB, V) reconstructed visible probabilities, (K,M) order
    """
    # In-kernel cast keeps the wrapper free of an extra HBM pass over v;
    # bf16 is exact for one-hot 0/1 values.
    v = v_ref[...].astype(jnp.bfloat16)                                  # (TB, V)

    # ---- sample_h_given_v (eval path: probabilities, no bernoulli) ----
    a_h = jnp.dot(v, w1_ref[...], preferred_element_type=jnp.float32)
    a_h = a_h + hb_ref[...]                                              # (TB, H)
    # sigmoid(x) = 0.5 * (tanh(x/2) + 1): tanh runs on the EUP slot.
    ph = 0.5 * (jnp.tanh(0.5 * a_h) + 1.0)

    # ---- sample_v_given_h ----
    # a_v[b, k*M + m] = sum_h w[m, k, h] * ph[b, h]; w2 is pre-permuted to
    # (H, V) with (K,M)-ordered columns, so this is a plain MXU matmul.
    pv = jnp.dot(ph.astype(jnp.bfloat16), w2_ref[...],
                 preferred_element_type=jnp.float32) + vb_ref[...]       # (TB, V)

    # ---- ratings_softmax over the K rating bins ----
    # Full-lane-width formulation: roll-tree group max/denominator (XLU),
    # one full-width exp (EUP), one unmasked lane-dense store.
    m_max = _group_broadcast_reduce(pv, jnp.maximum, K, M)
    e = jnp.exp(pv - m_max)
    denom = _group_broadcast_reduce(e, jnp.add, K, M)
    inv = pl.reciprocal(denom, approx=True)                              # EUP vrcp
    out_ref[...] = (e * inv).astype(out_ref.dtype)


def _pick_batch_tile(B):
    """Tile >=128 rows to amortize per-grid-step overhead and fill the MXU's
    M dimension; keep >=2 grid steps when the batch allows it so the single
    'parallel' axis can shard across v7x's two TensorCores."""
    if B < 16:
        return B
    tb = min(512, max(128, B // 2))
    tb = min(tb, B)
    return max(8, (tb // 8) * 8)


def _vmem_limit_bytes():
    """Per-generation VMEM budget: ~100 MiB on v5e/v6e (128 MiB physical),
    ~56 MiB on v7x (64 MiB physical), always leaving headroom for Mosaic
    internal scratch."""
    try:
        cap = int(pltpu.get_tpu_info().vmem_capacity_bytes)
    except Exception:
        cap = 64 * 1024 * 1024  # conservative fallback (v7x per-core VMEM)
    return min(100 * 1024 * 1024, max(32 * 1024 * 1024, cap - 8 * 1024 * 1024))


def _rbm_forward_flat_impl(v, w, hB, vB, tb, out_dtype):
    B, M, K = v.shape
    H = hB.shape[0]
    V = K * M

    if tb is None:
        tb = _pick_batch_tile(B)
    tb = int(min(tb, B))
    n_blocks = pl.cdiv(B, tb)
    B_pad = n_blocks * tb

    # Input side: natural (M,K)-flat order -> free reshape, no transpose, no
    # wrapper-side cast (cast happens in-kernel).
    v_flat = v.reshape(B, V)
    if B_pad != B:
        v_flat = jnp.pad(v_flat, ((0, B_pad - B), (0, 0)))

    # One-time weight/bias plumbing: O(V*H), independent of batch size.
    w1 = w.reshape(V, H).astype(jnp.bfloat16)                      # (V, H), (M,K) rows
    w2 = w.transpose(2, 1, 0).reshape(H, V).astype(jnp.bfloat16)   # (H, V), (K,M) cols
    hb2 = hB.reshape(1, H).astype(jnp.float32)
    vb2 = vB.transpose(1, 0).reshape(1, V).astype(jnp.float32)     # (1, V), (K,M)

    kernel = functools.partial(_rbm_forward_kernel, K=K, M=M)

    out_flat = pl.pallas_call(
        kernel,
        out_shape=jax.ShapeDtypeStruct((B_pad, V), out_dtype),
        grid=(n_blocks,),
        in_specs=[
            pl.BlockSpec((tb, V), lambda i: (i, 0)),   # v tile (pipelined)
            pl.BlockSpec((V, H), lambda i: (0, 0)),    # w1 (VMEM-resident)
            pl.BlockSpec((H, V), lambda i: (0, 0)),    # w2 (VMEM-resident)
            pl.BlockSpec((1, H), lambda i: (0, 0)),    # hB (resident)
            pl.BlockSpec((1, V), lambda i: (0, 0)),    # vB (resident)
        ],
        out_specs=pl.BlockSpec((tb, V), lambda i: (i, 0)),
        compiler_params=pltpu.CompilerParams(
            dimension_semantics=("parallel",),
            vmem_limit_bytes=_vmem_limit_bytes(),
        ),
    )(v_flat, w1, w2, hb2, vb2)

    return out_flat[:B]


@functools.partial(jax.jit, static_argnames=("tb", "out_dtype"))
def rbm_forward_flat(v, w, hB, vB, *, tb=None, out_dtype=jnp.float32):
    """Reconstruction as a flat (B, K*M) array in (K,M) column order
    (column k*M + m == rating bin k of movie m).  Preferred entry point for
    callers that can consume this layout (avoids the output transpose).
    `out_dtype=jnp.bfloat16` halves the kernel's HBM write traffic."""
    return _rbm_forward_flat_impl(v, w, hB, vB, tb, out_dtype)


@functools.partial(jax.jit, static_argnames=("tb",))
def rbm_forward(v, w, hB, vB, *, tb=None):
    """PyTorch-compatible output layout: v (B, M, K) -> (B, M, K) softmax
    reconstruction.  The final reshape/transpose is wrapper plumbing; use
    rbm_forward_flat to skip it."""
    B, M, K = v.shape
    out_flat = _rbm_forward_flat_impl(v, w, hB, vB, tb, jnp.float32)
    return out_flat.reshape(B, K, M).transpose(0, 2, 1)


def rbm_forward_ref(v, w, hB, vB):
    """Pure-JAX reference mirroring the PyTorch eval-mode forward
    (same bf16 weights / f32 accumulation as the kernel)."""
    B, M, K = v.shape
    H = hB.shape[0]
    w_b = w.astype(jnp.bfloat16)
    ph = jax.nn.sigmoid(
        jnp.dot(v.reshape(B, M * K).astype(jnp.bfloat16), w_b.reshape(M * K, H),
                preferred_element_type=jnp.float32) + hB)
    a = jnp.dot(ph.astype(jnp.bfloat16), w_b.reshape(M * K, H).T,
                preferred_element_type=jnp.float32).reshape(B, M, K)
    pv = vB[None, :, :] + a
    return jax.nn.softmax(pv, axis=-1)


if __name__ == "__main__":
    # Small shapes: visible_shape = (M, K) = (16, 8), hidden_shape = (H,) = (32,)
    # Batch B = 256 -> tile 128 x 2 grid steps (keeps both v7x TCs busy).
    B, M, K, H = 256, 16, 8, 32

    key = jax.random.PRNGKey(0)
    k_w, k_r = jax.random.split(key)

    # Deterministic parameter init matching nn.Parameter shapes in __init__:
    #   vB = zeros(visible_shape); hB = zeros(hidden_shape);
    #   w  = randn(visible_shape + hidden_shape) * 0.01
    vB = jnp.zeros((M, K), jnp.float32)
    hB = jnp.zeros((H,), jnp.float32)
    w = jax.random.normal(k_w, (M, K, H), jnp.float32) * 0.01

    # Sparse one-hot encoded visible input: a random rating bin per (batch, movie).
    ratings = jax.random.randint(k_r, (B, M), 0, K)
    v = jax.nn.one_hot(ratings, K, dtype=jnp.float32)          # (B, M, K)

    out = rbm_forward(v, w, hB, vB)
    out = jax.block_until_ready(out)

    ref = rbm_forward_ref(v, w, hB, vB)
    assert out.shape == (B, M, K)
    # Tolerance loosened slightly (1e-4 -> 1e-3) to cover the EUP approximate
    # reciprocal in the softmax normalization; observed error is far smaller.
    assert bool(jnp.allclose(out, ref, atol=1e-3, rtol=1e-3)), "mismatch vs JAX reference"

    print("KERNEL_OK")
</pallas_src>

<mosaic_0001>
module attributes {stable_mosaic.version = 11 : i64} {
  func.func @_rbm_forward_kernel(%arg0: i32, %arg1: memref<128x128xf32, #tpu.memory_space<vmem>>, %arg2: memref<128x32xbf16, #tpu.memory_space<vmem>>, %arg3: memref<32x128xbf16, #tpu.memory_space<vmem>>, %arg4: memref<1x32xf32, #tpu.memory_space<vmem>>, %arg5: memref<1x128xf32, #tpu.memory_space<vmem>>, %arg6: memref<128x128xf32, #tpu.memory_space<vmem>>) attributes {dimension_semantics = [#tpu.dimension_semantics<parallel>], iteration_bounds = array<i64: 2>, scalar_prefetch = 0 : i64, scratch_operands = 0 : i64, tpu.core_type = #tpu.core_type<tc>, window_params = [{transform_indices = @transform_0, window_bounds = array<i64: 128, 128>}, {pipeline_mode = #tpu.pipeline_mode<synchronous>, transform_indices = @transform_1, window_bounds = array<i64: 128, 32>}, {pipeline_mode = #tpu.pipeline_mode<synchronous>, transform_indices = @transform_2, window_bounds = array<i64: 32, 128>}, {pipeline_mode = #tpu.pipeline_mode<synchronous>, transform_indices = @transform_3, window_bounds = array<i64: 1, 32>}, {pipeline_mode = #tpu.pipeline_mode<synchronous>, transform_indices = @transform_4, window_bounds = array<i64: 1, 128>}, {transform_indices = @transform_5, window_bounds = array<i64: 128, 128>}]} {
    %c0 = arith.constant 0 : index
    %c0_0 = arith.constant 0 : index
    %0 = vector.load %arg1[%c0, %c0_0] : memref<128x128xf32, #tpu.memory_space<vmem>>, vector<128x128xf32>
    %1 = arith.truncf %0 : vector<128x128xf32> to vector<128x128xbf16>
    %c0_1 = arith.constant 0 : index
    %c0_2 = arith.constant 0 : index
    %2 = vector.load %arg2[%c0_1, %c0_2] : memref<128x32xbf16, #tpu.memory_space<vmem>>, vector<128x32xbf16>
    %cst = arith.constant dense<0.000000e+00> : vector<128x32xf32>
    %3 = tpu.matmul %1, %2, %cst {dimension_numbers = #tpu.dot_dimension_numbers<[1], [0], [0], [1], [0, 0, 1, 1], [], []>} : vector<128x128xbf16>, vector<128x32xbf16>, vector<128x32xf32> -> vector<128x32xf32>
    %c0_3 = arith.constant 0 : index
    %c0_4 = arith.constant 0 : index
    %4 = vector.load %arg4[%c0_3, %c0_4] : memref<1x32xf32, #tpu.memory_space<vmem>>, vector<1x32xf32>
    %5 = vector.broadcast %4 : vector<1x32xf32> to vector<128x32xf32>
    %6 = arith.addf %3, %5 : vector<128x32xf32>
    %cst_5 = arith.constant 5.000000e-01 : f32
    %7 = vector.broadcast %cst_5 : f32 to vector<128x32xf32>
    %8 = arith.mulf %7, %6 : vector<128x32xf32>
    %9 = math.tanh %8 : vector<128x32xf32>
    %cst_6 = arith.constant 1.000000e+00 : f32
    %10 = vector.broadcast %cst_6 : f32 to vector<128x32xf32>
    %11 = arith.addf %9, %10 : vector<128x32xf32>
    %cst_7 = arith.constant 5.000000e-01 : f32
    %12 = vector.broadcast %cst_7 : f32 to vector<128x32xf32>
    %13 = arith.mulf %12, %11 : vector<128x32xf32>
    %14 = arith.truncf %13 : vector<128x32xf32> to vector<128x32xbf16>
    %c0_8 = arith.constant 0 : index
    %c0_9 = arith.constant 0 : index
    %15 = vector.load %arg3[%c0_8, %c0_9] : memref<32x128xbf16, #tpu.memory_space<vmem>>, vector<32x128xbf16>
    %cst_10 = arith.constant dense<0.000000e+00> : vector<128x128xf32>
    %16 = tpu.matmul %14, %15, %cst_10 {dimension_numbers = #tpu.dot_dimension_numbers<[1], [0], [0], [1], [0, 0, 1, 1], [], []>} : vector<128x32xbf16>, vector<32x128xbf16>, vector<128x128xf32> -> vector<128x128xf32>
    %c0_11 = arith.constant 0 : index
    %c0_12 = arith.constant 0 : index
    %17 = vector.load %arg5[%c0_11, %c0_12] : memref<1x128xf32, #tpu.memory_space<vmem>>, vector<1x128xf32>
    %18 = vector.broadcast %17 : vector<1x128xf32> to vector<128x128xf32>
    %19 = arith.addf %16, %18 : vector<128x128xf32>
    %c16_i32 = arith.constant 16 : i32
    %20 = tpu.dynamic_rotate %19 by %c16_i32 dim 1 : vector<128x128xf32>, i32 -> vector<128x128xf32>
    %21 = arith.maximumf %19, %20 : vector<128x128xf32>
    %c32_i32 = arith.constant 32 : i32
    %22 = tpu.dynamic_rotate %21 by %c32_i32 dim 1 : vector<128x128xf32>, i32 -> vector<128x128xf32>
    %23 = arith.maximumf %21, %22 : vector<128x128xf32>
    %c64_i32 = arith.constant 64 : i32
    %24 = tpu.dynamic_rotate %23 by %c64_i32 dim 1 : vector<128x128xf32>, i32 -> vector<128x128xf32>
    %25 = arith.maximumf %23, %24 : vector<128x128xf32>
    %26 = arith.subf %19, %25 : vector<128x128xf32>
    %27 = math.exp %26 : vector<128x128xf32>
    %c16_i32_13 = arith.constant 16 : i32
    %28 = tpu.dynamic_rotate %27 by %c16_i32_13 dim 1 : vector<128x128xf32>, i32 -> vector<128x128xf32>
    %29 = arith.addf %27, %28 : vector<128x128xf32>
    %c32_i32_14 = arith.constant 32 : i32
    %30 = tpu.dynamic_rotate %29 by %c32_i32_14 dim 1 : vector<128x128xf32>, i32 -> vector<128x128xf32>
    %31 = arith.addf %29, %30 : vector<128x128xf32>
    %c64_i32_15 = arith.constant 64 : i32
    %32 = tpu.dynamic_rotate %31 by %c64_i32_15 dim 1 : vector<128x128xf32>, i32 -> vector<128x128xf32>
    %33 = arith.addf %31, %32 : vector<128x128xf32>
    %34 = tpu.reciprocal %33 {approx = true} : vector<128x128xf32> -> vector<128x128xf32>
    %35 = arith.mulf %27, %34 : vector<128x128xf32>
    %c0_16 = arith.constant 0 : index
    %c0_17 = arith.constant 0 : index
    %36 = vector.load %arg6[%c0_16, %c0_17] : memref<128x128xf32, #tpu.memory_space<vmem>>, vector<128x128xf32>
    tpu.vector_store %arg6[%c0_16, %c0_17], %35 {strides = array<i32>} : memref<128x128xf32, #tpu.memory_space<vmem>>, vector<128x128xf32>,
    return
  }
  func.func @transform_0(%arg0: i32) -> (i32, i32) {
    %c0_i32 = arith.constant 0 : i32
    %c0_i32_0 = arith.constant 0 : i32
    return %arg0, %c0_i32 : i32, i32
  }
  func.func @transform_1(%arg0: i32) -> (i32, i32) {
    %c0_i32 = arith.constant 0 : i32
    %c0_i32_0 = arith.constant 0 : i32
    %c0_i32_1 = arith.constant 0 : i32
    return %c0_i32, %c0_i32_0 : i32, i32
  }
  func.func @transform_2(%arg0: i32) -> (i32, i32) {
    %c0_i32 = arith.constant 0 : i32
    %c0_i32_0 = arith.constant 0 : i32
    %c0_i32_1 = arith.constant 0 : i32
    return %c0_i32, %c0_i32_0 : i32, i32
  }
  func.func @transform_3(%arg0: i32) -> (i32, i32) {
    %c0_i32 = arith.constant 0 : i32
    %c0_i32_0 = arith.constant 0 : i32
    %c0_i32_1 = arith.constant 0 : i32
    return %c0_i32, %c0_i32_0 : i32, i32
  }
  func.func @transform_4(%arg0: i32) -> (i32, i32) {
    %c0_i32 = arith.constant 0 : i32
    %c0_i32_0 = arith.constant 0 : i32
    %c0_i32_1 = arith.constant 0 : i32
    return %c0_i32, %c0_i32_0 : i32, i32
  }
  func.func @transform_5(%arg0: i32) -> (i32, i32) {
    %c0_i32 = arith.constant 0 : i32
    %c0_i32_0 = arith.constant 0 : i32
    return %arg0, %c0_i32 : i32, i32
  }
}

</mosaic_0001>

<llo_original>
// kernel: rbm_forward.1
$region0: #{rbm_forward.1}
  #allocation0 [shape = 'u32[]', space=smem, size = 0x4, offset = 0x4, fixed_abs, tag = 'smem constant byte address 0x4 - core index']
  #allocation1 [shape = 'u32[72,128]{1,0:T(1,128)}', space=vmem, size = 0x9000, scoped, tag = 'internal scratch']
  %s0 = inlined_call_operand.vmem [shape: f32[256,128], index: 0, kind: input, shape index: {}]
  %s1 = inlined_call_operand.vmem [shape: bf16[128,32], index: 1, kind: input, shape index: {}]
  %s2 = inlined_call_operand.vmem [shape: bf16[32,128], index: 2, kind: input, shape index: {}]
  %s3 = inlined_call_operand.vmem [shape: f32[1,32], index: 3, kind: input, shape index: {}]
  %s4 = inlined_call_operand.vmem [shape: f32[1,128], index: 4, kind: input, shape index: {}]
  %s5 = inlined_call_operand.vmem [shape: f32[256,128], index: 5, kind: output, shape index: {}]
  %s6 = sld [smem:[#allocation0]]
  $region53: #{rbm_forward.1} parent=0
    _
  %s8 = ssub.s32 1, %s6
  %s9 = scalar_select 0, %s8, %s6
  loop: start=0, step=1, limit=4
  $region2: #{rbm_forward.1} parent=0 // loop_pre_header
    _
  $region3: #{rbm_forward.1} parent=0 // loop_header
    %s11 = sphi 0, %s15
    %p12 = scmp.ge.s32.totalorder %s11, 4
    %s21 = sphi 0, %s23
    %s24 = sphi 0, %s21
    %s25 = sphi 0, %s24
    %s41 = sphi 0, %s25
    %s45 = sphi 0, %s45
    %s47 = sphi 0, %s45
    %s48 = sphi 0, %s47
    %s62 = sphi 0, %s48
    %s66 = sphi 0, %s66
    %s68 = sphi 0, %s66
    %s69 = sphi 0, %s68
    %s83 = sphi 0, %s69
    %s87 = sphi 0, %s87
    %s89 = sphi 0, %s87
    %s90 = sphi 0, %s89
    %s104 = sphi 0, %s90
    %s108 = sphi 0, %s108
    %s110 = sphi 0, %s108
    %s111 = sphi 0, %s110
    %s125 = sphi 0, %s111
    %s131 = sphi 0, %s133
    %s134 = sphi 0, %s131
    %s135 = sphi 0, %s134
    %s151 = sphi 0, %s135
  $region4: #{rbm_forward.1} parent=0 // loop_header_branch
    %14 = sbr.rel (%p12) target = $region8
  $region5: #{rbm_forward.1} parent=0 // loop_body
    %s16 = ssub.s32 %s11, 1
    %s17 = ssub.s32 %s11, 2
    %s18 = sadd.s32 %s11, 1
    %s19 = ssub.s32 %s11, %s18
    %p20 = scmp.eq.s32.totalorder %s19, 0
    %s22 = sadd.s32 %s21, 1
    %s23 = scalar_select %p20, %s21, %s22
    %p26 = pneg %p20
    %p27 = scmp.eq.s32.totalorder %s11, 1
    %p28 = por %p26, %p27
    %p29 = scmp.ne.s32.totalorder %s21, %s24
    %p30 = scmp.eq.s32.totalorder %s11, 0
    %p31 = por %p29, %p30
    %p32 = scmp.ne.s32.totalorder %s21, %s24
    %p33 = scmp.eq.s32.totalorder %s16, 1
    %p34 = por %p32, %p33
    %p35 = scmp.ne.s32.totalorder %s24, %s25
    %p36 = scmp.eq.s32.totalorder %s16, 0
    %p37 = por %p35, %p36
    %p38 = scmp.ne.s32.totalorder %s24, %s25
    %p39 = scmp.eq.s32.totalorder %s17, 1
    %p40 = por %p38, %p39
    %p42 = scmp.ne.s32.totalorder %s25, %s41
    %p43 = scmp.eq.s32.totalorder %s17, 0
    %p44 = por %p42, %p43
    %s46 = sadd.s32 %s45, 1
    %p49 = scmp.eq.s32.totalorder %s11, 1
    %p50 = scmp.ne.s32.totalorder %s45, %s47
    %p51 = scmp.eq.s32.totalorder %s11, 0
    %p52 = por %p50, %p51
    %p53 = scmp.ne.s32.totalorder %s45, %s47
    %p54 = scmp.eq.s32.totalorder %s16, 1
    %p55 = por %p53, %p54
    %p56 = scmp.ne.s32.totalorder %s47, %s48
    %p57 = scmp.eq.s32.totalorder %s16, 0
    %p58 = por %p56, %p57
    %p59 = scmp.ne.s32.totalorder %s47, %s48
    %p60 = scmp.eq.s32.totalorder %s17, 1
    %p61 = por %p59, %p60
    %p63 = scmp.ne.s32.totalorder %s48, %s62
    %p64 = scmp.eq.s32.totalorder %s17, 0
    %p65 = por %p63, %p64
    %s67 = sadd.s32 %s66, 1
    %p70 = scmp.eq.s32.totalorder %s11, 1
    %p71 = scmp.ne.s32.totalorder %s66, %s68
    %p72 = scmp.eq.s32.totalorder %s11, 0
    %p73 = por %p71, %p72
    %p74 = scmp.ne.s32.totalorder %s66, %s68
    %p75 = scmp.eq.s32.totalorder %s16, 1
    %p76 = por %p74, %p75
    %p77 = scmp.ne.s32.totalorder %s68, %s69
    %p78 = scmp.eq.s32.totalorder %s16, 0
    %p79 = por %p77, %p78
    %p80 = scmp.ne.s32.totalorder %s68, %s69
    %p81 = scmp.eq.s32.totalorder %s17, 1
    %p82 = por %p80, %p81
    %p84 = scmp.ne.s32.totalorder %s69, %s83
    %p85 = scmp.eq.s32.totalorder %s17, 0
    %p86 = por %p84, %p85
    %s88 = sadd.s32 %s87, 1
    %p91 = scmp.eq.s32.totalorder %s11, 1
    %p92 = scmp.ne.s32.totalorder %s87, %s89
    %p93 = scmp.eq.s32.totalorder %s11, 0
    %p94 = por %p92, %p93
    %p95 = scmp.ne.s32.totalorder %s87, %s89
    %p96 = scmp.eq.s32.totalorder %s16, 1
    %p97 = por %p95, %p96
    %p98 = scmp.ne.s32.totalorder %s89, %s90
    %p99 = scmp.eq.s32.totalorder %s16, 0
    %p100 = por %p98, %p99
    %p101 = scmp.ne.s32.totalorder %s89, %s90
    %p102 = scmp.eq.s32.totalorder %s17, 1
    %p103 = por %p101, %p102
    %p105 = scmp.ne.s32.totalorder %s90, %s104
    %p106 = scmp.eq.s32.totalorder %s17, 0
    %p107 = por %p105, %p106
    %s109 = sadd.s32 %s108, 1
    %p112 = scmp.eq.s32.totalorder %s11, 1
    %p113 = scmp.ne.s32.totalorder %s108, %s110
    %p114 = scmp.eq.s32.totalorder %s11, 0
    %p115 = por %p113, %p114
    %p116 = scmp.ne.s32.totalorder %s108, %s110
    %p117 = scmp.eq.s32.totalorder %s16, 1
    %p118 = por %p116, %p117
    %p119 = scmp.ne.s32.totalorder %s110, %s111
    %p120 = scmp.eq.s32.totalorder %s16, 0
    %p121 = por %p119, %p120
    %p122 = scmp.ne.s32.totalorder %s110, %s111
    %p123 = scmp.eq.s32.totalorder %s17, 1
    %p124 = por %p122, %p123
    %p126 = scmp.ne.s32.totalorder %s111, %s125
    %p127 = scmp.eq.s32.totalorder %s17, 0
    %p128 = por %p126, %p127
    %s129 = ssub.s32 %s11, %s18
    %p130 = scmp.eq.s32.totalorder %s129, 0
    %s132 = sadd.s32 %s131, 1
    %s133 = scalar_select %p130, %s131, %s132
    %p136 = pneg %p130
    %p137 = scmp.eq.s32.totalorder %s11, 1
    %p138 = por %p136, %p137
    %p139 = scmp.ne.s32.totalorder %s131, %s134
    %p140 = scmp.eq.s32.totalorder %s11, 0
    %p141 = por %p139, %p140
    %p142 = scmp.ne.s32.totalorder %s131, %s134
    %p143 = scmp.eq.s32.totalorder %s16, 1
    %p144 = por %p142, %p143
    %p145 = scmp.ne.s32.totalorder %s134, %s135
    %p146 = scmp.eq.s32.totalorder %s16, 0
    %p147 = por %p145, %p146
    %p148 = scmp.ne.s32.totalorder %s134, %s135
    %p149 = scmp.eq.s32.totalorder %s17, 1
    %p150 = por %p148, %p149
    %p152 = scmp.ne.s32.totalorder %s135, %s151
    %p153 = scmp.eq.s32.totalorder %s17, 0
    %p154 = por %p152, %p153
    %p155 = scmp.le.s32.totalorder 1, %s11
    %p156 = scmp.lt.s32.totalorder %s11, 3
    %p157 = pnand %p155, %p156
    %p158 = pneg %p157
    // Predicated region
    $region9: #{rbm_forward.1} parent=5 // pred_check
      _
    $region10: #{rbm_forward.1} parent=5 // pred_check_branch
      %160 = sbr.rel (%p157) target = $region12
    $region11: #{rbm_forward.1} parent=5 // pred_region
      %s161 = ssub.s32 %s11, 1
      // Predicated region
      $region13: #{rbm_forward.1} parent=11 // pred_check
        %p162 = pneg %p58
      $region14: #{rbm_forward.1} parent=11 // pred_check_branch
        %164 = sbr.rel (%p162) target = $region16
      $region15: #{rbm_forward.1} parent=11 // pred_region
        _
      $region16: #{rbm_forward.1} parent=11 // pred_fallthru
        _
      // Predicated region
      $region17: #{rbm_forward.1} parent=11 // pred_check
        %p165 = pneg %p79
      $region18: #{rbm_forward.1} parent=11 // pred_check_branch
        %167 = sbr.rel (%p165) target = $region20
      $region19: #{rbm_forward.1} parent=11 // pred_region
        _
      $region20: #{rbm_forward.1} parent=11 // pred_fallthru
        _
      // Predicated region
      $region21: #{rbm_forward.1} parent=11 // pred_check
        %p168 = pneg %p100
      $region22: #{rbm_forward.1} parent=11 // pred_check_branch
        %170 = sbr.rel (%p168) target = $region24
      $region23: #{rbm_forward.1} parent=11 // pred_region
        _
      $region24: #{rbm_forward.1} parent=11 // pred_fallthru
        _
      // Predicated region
      $region25: #{rbm_forward.1} parent=11 // pred_check
        %p171 = pneg %p121
      $region26: #{rbm_forward.1} parent=11 // pred_check_branch
        %173 = sbr.rel (%p171) target = $region28
      $region27: #{rbm_forward.1} parent=11 // pred_region
        _
      $region28: #{rbm_forward.1} parent=11 // pred_fallthru
        _
    $region12: #{rbm_forward.1} parent=5 // pred_fallthru
      _
    %p174 = scmp.lt.s32.totalorder %s11, 2
    // Predicated region
    $region29: #{rbm_forward.1} parent=5 // pred_check
      %p175 = pneg %p174
    $region30: #{rbm_forward.1} parent=5 // pred_check_branch
      %177 = sbr.rel (%p175) target = $region32
    $region31: #{rbm_forward.1} parent=5 // pred_region
      // Predicated region
      $region33: #{rbm_forward.1} parent=31 // pred_check
        %p178 = pneg %p31
      $region34: #{rbm_forward.1} parent=31 // pred_check_branch
        %180 = sbr.rel (%p178) target = $region36
      $region35: #{rbm_forward.1} parent=31 // pred_region
        %s181 = smul.u32 16, %s11
        %p182 = scmp.lt.s32.totalorder %s181, 31
        %s183 = scalar_select %p182, %s181, 31
        %s184 = smul.addr %s183, 8
        %s185 = scalar_lea.vmem %s0, %s184
        %s186 = smul.u32 16, %s11
      $region36: #{rbm_forward.1} parent=31 // pred_fallthru
        _
    $region32: #{rbm_forward.1} parent=5 // pred_fallthru
      _
    %p187 = scmp.le.s32.totalorder 1, %s11
    %p188 = scmp.lt.s32.totalorder %s11, 3
    %p189 = pnand %p187, %p188
    %p190 = pneg %p189
    // Predicated region
    $region37: #{rbm_forward.1} parent=5 // pred_check
      _
    $region38: #{rbm_forward.1} parent=5 // pred_check_branch
      %192 = sbr.rel (%p189) target = $region40
    $region39: #{rbm_forward.1} parent=5 // pred_region
      %s193 = ssub.s32 %s11, 1
      %s194 = smul.u32 16, %s16
      %p195 = scmp.lt.s32.totalorder %s194, 31
      %s196 = scalar_select %p195, %s194, 31
      %s197 = smul.addr %s196, 8
      %s198 = scalar_lea.vmem %s0, %s197
      %p199 = pneg %p37
      %p200 = pneg %p34
      %p201 = pneg %p58
      %p202 = pneg %p55
      %p203 = pneg %p79
      %p204 = pneg %p76
      %p205 = pneg %p100
      %p206 = pneg %p97
      %p207 = pneg %p121
      %p208 = pneg %p118
      %p209 = pneg %p147
      %p210 = pneg %p144
      %s211 = smul.u32 16, %s16
      %p212 = scmp.lt.s32.totalorder %s211, 31
      %s213 = scalar_select %p212, %s211, 31
      %s214 = smul.addr %s213, 8
      %s215 = scalar_lea.vmem %s5, %s214
      %s216 = smul.u32 16, %s16
      %p217 = scmp.lt.s32.totalorder %s216, 31
      %s218 = scalar_select %p217, %s216, 31
      %s219 = smul.addr %s218, 8
      %s220 = scalar_lea.vmem %s0, %s219
      %s221 = smul.u32 16, %s16
      %s222 = smul.u32 16, %s16
      %p223 = scmp.lt.s32.totalorder %s222, 31
      %s224 = scalar_select %p223, %s222, 31
      %s225 = smul.addr %s224, 8
      %s226 = scalar_lea.vmem %s5, %s225
      %s227 = smul.u32 16, %s16
      %v229 = vld [vmem:[%s220] sm:$0xff]
      %v230 = vld [vmem:[%s220 + $0x8] sm:$0xff]
      %v231 = vld [vmem:[%s220 + $0x10] sm:$0xff]
      %v232 = vld [vmem:[%s220 + $0x18] sm:$0xff]
      %v233 = vld [vmem:[%s220 + $0x20] sm:$0xff]
      %v234 = vld [vmem:[%s220 + $0x28] sm:$0xff]
      %v235 = vld [vmem:[%s220 + $0x30] sm:$0xff]
      %v236 = vld [vmem:[%s220 + $0x38] sm:$0xff]
      %v237 = vld [vmem:[%s220 + $0x40] sm:$0xff]
      %v238 = vld [vmem:[%s220 + $0x48] sm:$0xff]
      %v239 = vld [vmem:[%s220 + $0x50] sm:$0xff]
      %v240 = vld [vmem:[%s220 + $0x58] sm:$0xff]
      %v241 = vld [vmem:[%s220 + $0x60] sm:$0xff]
      %v242 = vld [vmem:[%s220 + $0x68] sm:$0xff]
      %v243 = vld [vmem:[%s220 + $0x70] sm:$0xff]
      %v244 = vld [vmem:[%s220 + $0x78] sm:$0xff]
      %v245 = vpack.c.bf16 %v230, %v229
      %v246 = vpack.c.bf16 %v232, %v231
      %v247 = vpack.c.bf16 %v234, %v233
      %v248 = vpack.c.bf16 %v236, %v235
      %v249 = vpack.c.bf16 %v238, %v237
      %v250 = vpack.c.bf16 %v240, %v239
      %v251 = vpack.c.bf16 %v242, %v241
      %v252 = vpack.c.bf16 %v244, %v243
      %v253 = vld [vmem:[%s1] sm:$0xf]
      %v254 = vld [vmem:[%s1 + $0x4] sm:$0xf]
      %v255 = vld [vmem:[%s1 + $0x8] sm:$0xf]
      %v256 = vld [vmem:[%s1 + $0xc] sm:$0xf]
      %v257 = vld [vmem:[%s1 + $0x10] sm:$0xf]
      %v258 = vld [vmem:[%s1 + $0x14] sm:$0xf]
      %v259 = vld [vmem:[%s1 + $0x18] sm:$0xf]
      %v260 = vld [vmem:[%s1 + $0x1c] sm:$0xf]
      %v261 = vld [vmem:[%s1 + $0x20] sm:$0xf]
      %v262 = vld [vmem:[%s1 + $0x24] sm:$0xf]
      %v263 = vld [vmem:[%s1 + $0x28] sm:$0xf]
      %v264 = vld [vmem:[%s1 + $0x2c] sm:$0xf]
      %v265 = vld [vmem:[%s1 + $0x30] sm:$0xf]
      %v266 = vld [vmem:[%s1 + $0x34] sm:$0xf]
      %v267 = vld [vmem:[%s1 + $0x38] sm:$0xf]
      %v268 = vld [vmem:[%s1 + $0x3c] sm:$0xf]
      %v269 = vld [vmem:[%s3] sm:$0x1]
      %v271 = vperm.slane %v269, 0
      %v289 = vunpack.c.l.b16 %v253
      %v290 = vunpack.c.l.b16 %v254
      %v291 = vunpack.c.l.b16 %v255
      %v292 = vunpack.c.l.b16 %v256
      %v293 = vunpack.c.l.b16 %v257
      %v294 = vunpack.c.l.b16 %v258
      %v295 = vunpack.c.l.b16 %v259
      %v296 = vunpack.c.l.b16 %v260
      %v297 = vunpack.c.l.b16 %v261
      %v298 = vunpack.c.l.b16 %v262
      %v299 = vunpack.c.l.b16 %v263
      %v300 = vunpack.c.l.b16 %v264
      %v301 = vunpack.c.l.b16 %v265
      %v302 = vunpack.c.l.b16 %v266
      %v303 = vunpack.c.l.b16 %v267
      %v304 = vunpack.c.l.b16 %v268
      %v305 = vpack.c.b16 %v290, %v289
      %v306 = vpack.c.b16 %v292, %v291
      %v307 = vpack.c.b16 %v294, %v293
      %v308 = vpack.c.b16 %v296, %v295
      %v309 = vpack.c.b16 %v298, %v297
      %v310 = vpack.c.b16 %v300, %v299
      %v311 = vpack.c.b16 %v302, %v301
      %v312 = vpack.c.b16 %v304, %v303
      %321 = vmatpush.bf16.msra.mxu0 %v312
      %322 = vmatpush.bf16.msra.mxu0 %v311
      %323 = vmatpush.bf16.msra.mxu0 %v310
      %324 = vmatpush.bf16.msra.mxu0 %v309
      %325 = vmatpush.bf16.msra.mxu0 %v308
      %326 = vmatpush.bf16.msra.mxu0 %v307
      %327 = vmatpush.bf16.msra.mxu0 %v306
      %328 = vmatpush.bf16.msra.mxu0 %v305
      %329 = vmatmul.bf16.gmra.mxu0 %v245
      %v330 = vpop.f32.mrf.mxu0
      %v331 = vadd.f32 %v271, %v330
      %v332 = vpop.f32.mrf.mxu0
      %v333 = vadd.f32 %v271, %v332
      %334 = vmatmul.bf16.gmra.mxu0 %v246
      %v335 = vpop.f32.mrf.mxu0
      %v336 = vadd.f32 %v271, %v335
      %v337 = vpop.f32.mrf.mxu0
      %v338 = vadd.f32 %v271, %v337
      %339 = vmatmul.bf16.gmra.mxu0 %v247
      %v340 = vpop.f32.mrf.mxu0
      %v341 = vadd.f32 %v271, %v340
      %v342 = vpop.f32.mrf.mxu0
      %v343 = vadd.f32 %v271, %v342
      %344 = vmatmul.bf16.gmra.mxu0 %v248
      %v345 = vpop.f32.mrf.mxu0
      %v346 = vadd.f32 %v271, %v345
      %v347 = vpop.f32.mrf.mxu0
      %v348 = vadd.f32 %v271, %v347
      %349 = vmatmul.bf16.gmra.mxu0 %v249
      %v350 = vpop.f32.mrf.mxu0
      %v351 = vadd.f32 %v271, %v350
      %v352 = vpop.f32.mrf.mxu0
      %v353 = vadd.f32 %v271, %v352
      %354 = vmatmul.bf16.gmra.mxu0 %v250
      %v355 = vpop.f32.mrf.mxu0
      %v356 = vadd.f32 %v271, %v355
      %v357 = vpop.f32.mrf.mxu0
      %v358 = vadd.f32 %v271, %v357
      %359 = vmatmul.bf16.gmra.mxu0 %v251
      %v360 = vpop.f32.mrf.mxu0
      %v361 = vadd.f32 %v271, %v360
      %v362 = vpop.f32.mrf.mxu0
      %v363 = vadd.f32 %v271, %v362
      %364 = vmatmul.bf16.gmra.mxu0 %v252
      %v365 = vpop.f32.mrf.mxu0
      %v366 = vadd.f32 %v271, %v365
      %v367 = vpop.f32.mrf.mxu0
      %v368 = vadd.f32 %v271, %v367
      %369 = vdwg.mxu0
      %v370 = vmul.f32 %v331, 0.5
      %v371 = vmul.f32 %v333, 0.5
      %v372 = vmul.f32 %v336, 0.5
      %v373 = vmul.f32 %v338, 0.5
      %v374 = vmul.f32 %v341, 0.5
      %v375 = vmul.f32 %v343, 0.5
      %v376 = vmul.f32 %v346, 0.5
      %v377 = vmul.f32 %v348, 0.5
      %v378 = vmul.f32 %v351, 0.5
      %v379 = vmul.f32 %v353, 0.5
      %v380 = vmul.f32 %v356, 0.5
      %v381 = vmul.f32 %v358, 0.5
      %v382 = vmul.f32 %v361, 0.5
      %v383 = vmul.f32 %v363, 0.5
      %v384 = vmul.f32 %v366, 0.5
      %v385 = vmul.f32 %v368, 0.5
      %v386 = vtanh.pop %v370
      %v387 = vtanh.pop %v371
      %v388 = vtanh.pop %v372
      %v389 = vtanh.pop %v373
      %v390 = vtanh.pop %v374
      %v391 = vtanh.pop %v375
      %v392 = vtanh.pop %v376
      %v393 = vtanh.pop %v377
      %v394 = vtanh.pop %v378
      %v395 = vtanh.pop %v379
      %v396 = vtanh.pop %v380
      %v397 = vtanh.pop %v381
      %v398 = vtanh.pop %v382
      %v399 = vtanh.pop %v383
      %v400 = vtanh.pop %v384
      %v401 = vtanh.pop %v385
      %v402 = vadd.f32 %v386, 1.0
      %v403 = vadd.f32 %v387, 1.0
      %v404 = vadd.f32 %v388, 1.0
      %v405 = vadd.f32 %v389, 1.0
      %v406 = vadd.f32 %v390, 1.0
      %v407 = vadd.f32 %v391, 1.0
      %v408 = vadd.f32 %v392, 1.0
      %v409 = vadd.f32 %v393, 1.0
      %v410 = vadd.f32 %v394, 1.0
      %v411 = vadd.f32 %v395, 1.0
      %v412 = vadd.f32 %v396, 1.0
      %v413 = vadd.f32 %v397, 1.0
      %v414 = vadd.f32 %v398, 1.0
      %v415 = vadd.f32 %v399, 1.0
      %v416 = vadd.f32 %v400, 1.0
      %v417 = vadd.f32 %v401, 1.0
      %v418 = vmul.f32 %v402, 0.5
      %v419 = vmul.f32 %v403, 0.5
      %v420 = vmul.f32 %v404, 0.5
      %v421 = vmul.f32 %v405, 0.5
      %v422 = vmul.f32 %v406, 0.5
      %v423 = vmul.f32 %v407, 0.5
      %v424 = vmul.f32 %v408, 0.5
      %v425 = vmul.f32 %v409, 0.5
      %v426 = vmul.f32 %v410, 0.5
      %v427 = vmul.f32 %v411, 0.5
      %v428 = vmul.f32 %v412, 0.5
      %v429 = vmul.f32 %v413, 0.5
      %v430 = vmul.f32 %v414, 0.5
      %v431 = vmul.f32 %v415, 0.5
      %v432 = vmul.f32 %v416, 0.5
      %v433 = vmul.f32 %v417, 0.5
      %v434 = vpack.c.bf16 %v419, %v418
      %v435 = vpack.c.bf16 %v421, %v420
      %v436 = vpack.c.bf16 %v423, %v422
      %v437 = vpack.c.bf16 %v425, %v424
      %v438 = vpack.c.bf16 %v427, %v426
      %v439 = vpack.c.bf16 %v429, %v428
      %v440 = vpack.c.bf16 %v431, %v430
      %v441 = vpack.c.bf16 %v433, %v432
      %v442 = vld [vmem:[%s2] sm:$0xf]
      %v443 = vld [vmem:[%s2 + $0x4] sm:$0xf]
      %v444 = vld [vmem:[%s2 + $0x8] sm:$0xf]
      %v445 = vld [vmem:[%s2 + $0xc] sm:$0xf]
      %v446 = vld [vmem:[%s4] sm:$0x1]
      %v448 = vperm.slane %v446, 0
      %v454 = vunpack.c.l.b16 %v442
      %v455 = vunpack.c.l.b16 %v443
      %v456 = vunpack.c.l.b16 %v444
      %v457 = vunpack.c.l.b16 %v445
      %v458 = vpack.c.b16 %v455, %v454
      %v459 = vpack.c.b16 %v457, %v456
      %vm462 = vcmask 261120
      %v464 = vsel %vm462, %v434, 0
      %v467 = vsel %vm462, %v435, 0
      %v470 = vsel %vm462, %v436, 0
      %v473 = vsel %vm462, %v437, 0
      %v476 = vsel %vm462, %v438, 0
      %v479 = vsel %vm462, %v439, 0
      %v482 = vsel %vm462, %v440, 0
      %v485 = vsel %vm462, %v441, 0
      %487 = vmatpush.bf16.msra.mxu0 0
      %488 = vmatpush.bf16.msra.mxu0 0
      %489 = vmatpush.bf16.msra.mxu0 0
      %490 = vmatpush.bf16.msra.mxu0 0
      %491 = vmatpush.bf16.msra.mxu0 0
      %492 = vmatpush.bf16.msra.mxu0 0
      %493 = vmatpush.bf16.msra.mxu0 %v459
      %494 = vmatpush.bf16.msra.mxu0 %v458
      %495 = vmatmul.bf16.gmra.mxu0 %v464
      %v496 = vpop.f32.mrf.mxu0
      %v497 = vadd.f32 %v448, %v496
      %v498 = vpop.f32.mrf.mxu0
      %v499 = vadd.f32 %v448, %v498
      %500 = vmatmul.bf16.gmra.mxu0 %v467
      %v501 = vpop.f32.mrf.mxu0
      %v502 = vadd.f32 %v448, %v501
      %v503 = vpop.f32.mrf.mxu0
      %v504 = vadd.f32 %v448, %v503
      %505 = vmatmul.bf16.gmra.mxu0 %v470
      %v506 = vpop.f32.mrf.mxu0
      %v507 = vadd.f32 %v448, %v506
      %v508 = vpop.f32.mrf.mxu0
      %v509 = vadd.f32 %v448, %v508
      %510 = vmatmul.bf16.gmra.mxu0 %v473
      %v511 = vpop.f32.mrf.mxu0
      %v512 = vadd.f32 %v448, %v511
      %v513 = vpop.f32.mrf.mxu0
      %v514 = vadd.f32 %v448, %v513
      %515 = vmatmul.bf16.gmra.mxu0 %v476
      %v516 = vpop.f32.mrf.mxu0
      %v517 = vadd.f32 %v448, %v516
      %v518 = vpop.f32.mrf.mxu0
      %v519 = vadd.f32 %v448, %v518
      %520 = vmatmul.bf16.gmra.mxu0 %v479
      %v521 = vpop.f32.mrf.mxu0
      %v522 = vadd.f32 %v448, %v521
      %v523 = vpop.f32.mrf.mxu0
      %v524 = vadd.f32 %v448, %v523
      %525 = vmatmul.bf16.gmra.mxu0 %v482
      %v526 = vpop.f32.mrf.mxu0
      %v527 = vadd.f32 %v448, %v526
      %v528 = vpop.f32.mrf.mxu0
      %v529 = vadd.f32 %v448, %v528
      %530 = vmatmul.bf16.gmra.mxu0 %v485
      %v531 = vpop.f32.mrf.mxu0
      %v532 = vadd.f32 %v448, %v531
      %v533 = vpop.f32.mrf.mxu0
      %v534 = vadd.f32 %v448, %v533
      %535 = vdwg.mxu0
      %536 = vrot.lane.b32.xlu0 %v497, 16
      %v537 = vpop.permute.xlu0 %536
      %538 = vrot.lane.b32.xlu0 %v499, 16
      %v539 = vpop.permute.xlu0 %538
      %540 = vrot.lane.b32.xlu0 %v502, 16
      %v541 = vpop.permute.xlu0 %540
      %542 = vrot.lane.b32.xlu0 %v504, 16
      %v543 = vpop.permute.xlu0 %542
      %544 = vrot.lane.b32.xlu0 %v507, 16
      %v545 = vpop.permute.xlu0 %544
      %546 = vrot.lane.b32.xlu0 %v509, 16
      %v547 = vpop.permute.xlu0 %546
      %548 = vrot.lane.b32.xlu0 %v512, 16
      %v549 = vpop.permute.xlu0 %548
      %550 = vrot.lane.b32.xlu0 %v514, 16
      %v551 = vpop.permute.xlu0 %550
      %552 = vrot.lane.b32.xlu0 %v517, 16
      %v553 = vpop.permute.xlu0 %552
      %554 = vrot.lane.b32.xlu0 %v519, 16
      %v555 = vpop.permute.xlu0 %554
      %556 = vrot.lane.b32.xlu0 %v522, 16
      %v557 = vpop.permute.xlu0 %556
      %558 = vrot.lane.b32.xlu0 %v524, 16
      %v559 = vpop.permute.xlu0 %558
      %560 = vrot.lane.b32.xlu0 %v527, 16
      %v561 = vpop.permute.xlu0 %560
      %562 = vrot.lane.b32.xlu0 %v529, 16
      %v563 = vpop.permute.xlu0 %562
      %564 = vrot.lane.b32.xlu0 %v532, 16
      %v565 = vpop.permute.xlu0 %564
      %566 = vrot.lane.b32.xlu0 %v534, 16
      %v567 = vpop.permute.xlu0 %566
      %v568 = vmax.f32 %v497, %v537
      %v569 = vmax.f32 %v499, %v539
      %v570 = vmax.f32 %v502, %v541
      %v571 = vmax.f32 %v504, %v543
      %v572 = vmax.f32 %v507, %v545
      %v573 = vmax.f32 %v509, %v547
      %v574 = vmax.f32 %v512, %v549
      %v575 = vmax.f32 %v514, %v551
      %v576 = vmax.f32 %v517, %v553
      %v577 = vmax.f32 %v519, %v555
      %v578 = vmax.f32 %v522, %v557
      %v579 = vmax.f32 %v524, %v559
      %v580 = vmax.f32 %v527, %v561
      %v581 = vmax.f32 %v529, %v563
      %v582 = vmax.f32 %v532, %v565
      %v583 = vmax.f32 %v534, %v567
      %584 = vrot.lane.b32.xlu0 %v568, 32
      %v585 = vpop.permute.xlu0 %584
      %586 = vrot.lane.b32.xlu0 %v569, 32
      %v587 = vpop.permute.xlu0 %586
      %588 = vrot.lane.b32.xlu0 %v570, 32
      %v589 = vpop.permute.xlu0 %588
      %590 = vrot.lane.b32.xlu0 %v571, 32
      %v591 = vpop.permute.xlu0 %590
      %592 = vrot.lane.b32.xlu0 %v572, 32
      %v593 = vpop.permute.xlu0 %592
      %594 = vrot.lane.b32.xlu0 %v573, 32
      %v595 = vpop.permute.xlu0 %594
      %596 = vrot.lane.b32.xlu0 %v574, 32
      %v597 = vpop.permute.xlu0 %596
      %598 = vrot.lane.b32.xlu0 %v575, 32
      %v599 = vpop.permute.xlu0 %598
      %600 = vrot.lane.b32.xlu0 %v576, 32
      %v601 = vpop.permute.xlu0 %600
      %602 = vrot.lane.b32.xlu0 %v577, 32
      %v603 = vpop.permute.xlu0 %602
      %604 = vrot.lane.b32.xlu0 %v578, 32
      %v605 = vpop.permute.xlu0 %604
      %606 = vrot.lane.b32.xlu0 %v579, 32
      %v607 = vpop.permute.xlu0 %606
      %608 = vrot.lane.b32.xlu0 %v580, 32
      %v609 = vpop.permute.xlu0 %608
      %610 = vrot.lane.b32.xlu0 %v581, 32
      %v611 = vpop.permute.xlu0 %610
      %612 = vrot.lane.b32.xlu0 %v582, 32
      %v613 = vpop.permute.xlu0 %612
      %614 = vrot.lane.b32.xlu0 %v583, 32
      %v615 = vpop.permute.xlu0 %614
      %v616 = vmax.f32 %v568, %v585
      %v617 = vmax.f32 %v569, %v587
      %v618 = vmax.f32 %v570, %v589
      %v619 = vmax.f32 %v571, %v591
      %v620 = vmax.f32 %v572, %v593
      %v621 = vmax.f32 %v573, %v595
      %v622 = vmax.f32 %v574, %v597
      %v623 = vmax.f32 %v575, %v599
      %v624 = vmax.f32 %v576, %v601
      %v625 = vmax.f32 %v577, %v603
      %v626 = vmax.f32 %v578, %v605
      %v627 = vmax.f32 %v579, %v607
      %v628 = vmax.f32 %v580, %v609
      %v629 = vmax.f32 %v581, %v611
      %v630 = vmax.f32 %v582, %v613
      %v631 = vmax.f32 %v583, %v615
      %632 = vrot.lane.b32.xlu0 %v616, 64
      %v633 = vpop.permute.xlu0 %632
      %634 = vrot.lane.b32.xlu0 %v617, 64
      %v635 = vpop.permute.xlu0 %634
      %636 = vrot.lane.b32.xlu0 %v618, 64
      %v637 = vpop.permute.xlu0 %636
      %638 = vrot.lane.b32.xlu0 %v619, 64
      %v639 = vpop.permute.xlu0 %638
      %640 = vrot.lane.b32.xlu0 %v620, 64
      %v641 = vpop.permute.xlu0 %640
      %642 = vrot.lane.b32.xlu0 %v621, 64
      %v643 = vpop.permute.xlu0 %642
      %644 = vrot.lane.b32.xlu0 %v622, 64
      %v645 = vpop.permute.xlu0 %644
      %646 = vrot.lane.b32.xlu0 %v623, 64
      %v647 = vpop.permute.xlu0 %646
      %648 = vrot.lane.b32.xlu0 %v624, 64
      %v649 = vpop.permute.xlu0 %648
      %650 = vrot.lane.b32.xlu0 %v625, 64
      %v651 = vpop.permute.xlu0 %650
      %652 = vrot.lane.b32.xlu0 %v626, 64
      %v653 = vpop.permute.xlu0 %652
      %654 = vrot.lane.b32.xlu0 %v627, 64
      %v655 = vpop.permute.xlu0 %654
      %656 = vrot.lane.b32.xlu0 %v628, 64
      %v657 = vpop.permute.xlu0 %656
      %658 = vrot.lane.b32.xlu0 %v629, 64
      %v659 = vpop.permute.xlu0 %658
      %660 = vrot.lane.b32.xlu0 %v630, 64
      %v661 = vpop.permute.xlu0 %660
      %662 = vrot.lane.b32.xlu0 %v631, 64
      %v663 = vpop.permute.xlu0 %662
      %v664 = vmax.f32 %v616, %v633
      %v665 = vmax.f32 %v617, %v635
      %v666 = vmax.f32 %v618, %v637
      %v667 = vmax.f32 %v619, %v639
      %v668 = vmax.f32 %v620, %v641
      %v669 = vmax.f32 %v621, %v643
      %v670 = vmax.f32 %v622, %v645
      %v671 = vmax.f32 %v623, %v647
      %v672 = vmax.f32 %v624, %v649
      %v673 = vmax.f32 %v625, %v651
      %v674 = vmax.f32 %v626, %v653
      %v675 = vmax.f32 %v627, %v655
      %v676 = vmax.f32 %v628, %v657
      %v677 = vmax.f32 %v629, %v659
      %v678 = vmax.f32 %v630, %v661
      %v679 = vmax.f32 %v631, %v663
      %v680 = vsub.f32 %v497, %v664
      %v681 = vsub.f32 %v499, %v665
      %v682 = vsub.f32 %v502, %v666
      %v683 = vsub.f32 %v504, %v667
      %v684 = vsub.f32 %v507, %v668
      %v685 = vsub.f32 %v509, %v669
      %v686 = vsub.f32 %v512, %v670
      %v687 = vsub.f32 %v514, %v671
      %v688 = vsub.f32 %v517, %v672
      %v689 = vsub.f32 %v519, %v673
      %v690 = vsub.f32 %v522, %v674
      %v691 = vsub.f32 %v524, %v675
      %v692 = vsub.f32 %v527, %v676
      %v693 = vsub.f32 %v529, %v677
      %v694 = vsub.f32 %v532, %v678
      %v695 = vsub.f32 %v534, %v679
      %v696 = vmul.f32 %v680, 1.442695
      %v697 = vpow.pop %v696
      %v698 = vmul.f32 %v681, 1.442695
      %v699 = vpow.pop %v698
      %v700 = vmul.f32 %v682, 1.442695
      %v701 = vpow.pop %v700
      %v702 = vmul.f32 %v683, 1.442695
      %v703 = vpow.pop %v702
      %v704 = vmul.f32 %v684, 1.442695
      %v705 = vpow.pop %v704
      %v706 = vmul.f32 %v685, 1.442695
      %v707 = vpow.pop %v706
      %v708 = vmul.f32 %v686, 1.442695
      %v709 = vpow.pop %v708
      %v710 = vmul.f32 %v687, 1.442695
      %v711 = vpow.pop %v710
      %v712 = vmul.f32 %v688, 1.442695
      %v713 = vpow.pop %v712
      %v714 = vmul.f32 %v689, 1.442695
      %v715 = vpow.pop %v714
      %v716 = vmul.f32 %v690, 1.442695
      %v717 = vpow.pop %v716
      %v718 = vmul.f32 %v691, 1.442695
      %v719 = vpow.pop %v718
      %v720 = vmul.f32 %v692, 1.442695
      %v721 = vpow.pop %v720
      %v722 = vmul.f32 %v693, 1.442695
      %v723 = vpow.pop %v722
      %v724 = vmul.f32 %v694, 1.442695
      %v725 = vpow.pop %v724
      %v726 = vmul.f32 %v695, 1.442695
      %v727 = vpow.pop %v726
      %728 = vrot.lane.b32.xlu0 %v697, 16
      %v729 = vpop.permute.xlu0 %728
      %730 = vrot.lane.b32.xlu0 %v699, 16
      %v731 = vpop.permute.xlu0 %730
      %732 = vrot.lane.b32.xlu0 %v701, 16
      %v733 = vpop.permute.xlu0 %732
      %734 = vrot.lane.b32.xlu0 %v703, 16
      %v735 = vpop.permute.xlu0 %734
      %736 = vrot.lane.b32.xlu0 %v705, 16
      %v737 = vpop.permute.xlu0 %736
      %738 = vrot.lane.b32.xlu0 %v707, 16
      %v739 = vpop.permute.xlu0 %738
      %740 = vrot.lane.b32.xlu0 %v709, 16
      %v741 = vpop.permute.xlu0 %740
      %742 = vrot.lane.b32.xlu0 %v711, 16
      %v743 = vpop.permute.xlu0 %742
      %744 = vrot.lane.b32.xlu0 %v713, 16
      %v745 = vpop.permute.xlu0 %744
      %746 = vrot.lane.b32.xlu0 %v715, 16
      %v747 = vpop.permute.xlu0 %746
      %748 = vrot.lane.b32.xlu0 %v717, 16
      %v749 = vpop.permute.xlu0 %748
      %750 = vrot.lane.b32.xlu0 %v719, 16
      %v751 = vpop.permute.xlu0 %750
      %752 = vrot.lane.b32.xlu0 %v721, 16
      %v753 = vpop.permute.xlu0 %752
      %754 = vrot.lane.b32.xlu0 %v723, 16
      %v755 = vpop.permute.xlu0 %754
      %756 = vrot.lane.b32.xlu0 %v725, 16
      %v757 = vpop.permute.xlu0 %756
      %758 = vrot.lane.b32.xlu0 %v727, 16
      %v759 = vpop.permute.xlu0 %758
      %v760 = vadd.f32 %v697, %v729
      %v761 = vadd.f32 %v699, %v731
      %v762 = vadd.f32 %v701, %v733
      %v763 = vadd.f32 %v703, %v735
      %v764 = vadd.f32 %v705, %v737
      %v765 = vadd.f32 %v707, %v739
      %v766 = vadd.f32 %v709, %v741
      %v767 = vadd.f32 %v711, %v743
      %v768 = vadd.f32 %v713, %v745
      %v769 = vadd.f32 %v715, %v747
      %v770 = vadd.f32 %v717, %v749
      %v771 = vadd.f32 %v719, %v751
      %v772 = vadd.f32 %v721, %v753
      %v773 = vadd.f32 %v723, %v755
      %v774 = vadd.f32 %v725, %v757
      %v775 = vadd.f32 %v727, %v759
      %776 = vrot.lane.b32.xlu0 %v760, 32
      %v777 = vpop.permute.xlu0 %776
      %778 = vrot.lane.b32.xlu0 %v761, 32
      %v779 = vpop.permute.xlu0 %778
      %780 = vrot.lane.b32.xlu0 %v762, 32
      %v781 = vpop.permute.xlu0 %780
      %782 = vrot.lane.b32.xlu0 %v763, 32
      %v783 = vpop.permute.xlu0 %782
      %784 = vrot.lane.b32.xlu0 %v764, 32
      %v785 = vpop.permute.xlu0 %784
      %786 = vrot.lane.b32.xlu0 %v765, 32
      %v787 = vpop.permute.xlu0 %786
      %788 = vrot.lane.b32.xlu0 %v766, 32
      %v789 = vpop.permute.xlu0 %788
      %790 = vrot.lane.b32.xlu0 %v767, 32
      %v791 = vpop.permute.xlu0 %790
      %792 = vrot.lane.b32.xlu0 %v768, 32
      %v793 = vpop.permute.xlu0 %792
      %794 = vrot.lane.b32.xlu0 %v769, 32
      %v795 = vpop.permute.xlu0 %794
      %796 = vrot.lane.b32.xlu0 %v770, 32
      %v797 = vpop.permute.xlu0 %796
      %798 = vrot.lane.b32.xlu0 %v771, 32
      %v799 = vpop.permute.xlu0 %798
      %800 = vrot.lane.b32.xlu0 %v772, 32
      %v801 = vpop.permute.xlu0 %800
      %802 = vrot.lane.b32.xlu0 %v773, 32
      %v803 = vpop.permute.xlu0 %802
      %804 = vrot.lane.b32.xlu0 %v774, 32
      %v805 = vpop.permute.xlu0 %804
      %806 = vrot.lane.b32.xlu0 %v775, 32
      %v807 = vpop.permute.xlu0 %806
      %v808 = vadd.f32 %v760, %v777
      %v809 = vadd.f32 %v761, %v779
      %v810 = vadd.f32 %v762, %v781
      %v811 = vadd.f32 %v763, %v783
      %v812 = vadd.f32 %v764, %v785
      %v813 = vadd.f32 %v765, %v787
      %v814 = vadd.f32 %v766, %v789
      %v815 = vadd.f32 %v767, %v791
      %v816 = vadd.f32 %v768, %v793
      %v817 = vadd.f32 %v769, %v795
      %v818 = vadd.f32 %v770, %v797
      %v819 = vadd.f32 %v771, %v799
      %v820 = vadd.f32 %v772, %v801
      %v821 = vadd.f32 %v773, %v803
      %v822 = vadd.f32 %v774, %v805
      %v823 = vadd.f32 %v775, %v807
      %824 = vrot.lane.b32.xlu0 %v808, 64
      %v825 = vpop.permute.xlu0 %824
      %826 = vrot.lane.b32.xlu0 %v809, 64
      %v827 = vpop.permute.xlu0 %826
      %828 = vrot.lane.b32.xlu0 %v810, 64
      %v829 = vpop.permute.xlu0 %828
      %830 = vrot.lane.b32.xlu0 %v811, 64
      %v831 = vpop.permute.xlu0 %830
      %832 = vrot.lane.b32.xlu0 %v812, 64
      %v833 = vpop.permute.xlu0 %832
      %834 = vrot.lane.b32.xlu0 %v813, 64
      %v835 = vpop.permute.xlu0 %834
      %836 = vrot.lane.b32.xlu0 %v814, 64
      %v837 = vpop.permute.xlu0 %836
      %838 = vrot.lane.b32.xlu0 %v815, 64
      %v839 = vpop.permute.xlu0 %838
      %840 = vrot.lane.b32.xlu0 %v816, 64
      %v841 = vpop.permute.xlu0 %840
      %842 = vrot.lane.b32.xlu0 %v817, 64
      %v843 = vpop.permute.xlu0 %842
      %844 = vrot.lane.b32.xlu0 %v818, 64
      %v845 = vpop.permute.xlu0 %844
      %846 = vrot.lane.b32.xlu0 %v819, 64
      %v847 = vpop.permute.xlu0 %846
      %848 = vrot.lane.b32.xlu0 %v820, 64
      %v849 = vpop.permute.xlu0 %848
      %850 = vrot.lane.b32.xlu0 %v821, 64
      %v851 = vpop.permute.xlu0 %850
      %852 = vrot.lane.b32.xlu0 %v822, 64
      %v853 = vpop.permute.xlu0 %852
      %854 = vrot.lane.b32.xlu0 %v823, 64
      %v855 = vpop.permute.xlu0 %854
      %v856 = vadd.f32 %v808, %v825
      %v857 = vadd.f32 %v809, %v827
      %v858 = vadd.f32 %v810, %v829
      %v859 = vadd.f32 %v811, %v831
      %v860 = vadd.f32 %v812, %v833
      %v861 = vadd.f32 %v813, %v835
      %v862 = vadd.f32 %v814, %v837
      %v863 = vadd.f32 %v815, %v839
      %v864 = vadd.f32 %v816, %v841
      %v865 = vadd.f32 %v817, %v843
      %v866 = vadd.f32 %v818, %v845
      %v867 = vadd.f32 %v819, %v847
      %v868 = vadd.f32 %v820, %v849
      %v869 = vadd.f32 %v821, %v851
      %v870 = vadd.f32 %v822, %v853
      %v871 = vadd.f32 %v823, %v855
      %v872 = vrcp.pop %v856
      %v873 = vrcp.pop %v857
      %v874 = vrcp.pop %v858
      %v875 = vrcp.pop %v859
      %v876 = vrcp.pop %v860
      %v877 = vrcp.pop %v861
      %v878 = vrcp.pop %v862
      %v879 = vrcp.pop %v863
      %v880 = vrcp.pop %v864
      %v881 = vrcp.pop %v865
      %v882 = vrcp.pop %v866
      %v883 = vrcp.pop %v867
      %v884 = vrcp.pop %v868
      %v885 = vrcp.pop %v869
      %v886 = vrcp.pop %v870
      %v887 = vrcp.pop %v871
      %v888 = vmul.f32 %v697, %v872
      %v889 = vmul.f32 %v699, %v873
      %v890 = vmul.f32 %v701, %v874
      %v891 = vmul.f32 %v703, %v875
      %v892 = vmul.f32 %v705, %v876
      %v893 = vmul.f32 %v707, %v877
      %v894 = vmul.f32 %v709, %v878
      %v895 = vmul.f32 %v711, %v879
      %v896 = vmul.f32 %v713, %v880
      %v897 = vmul.f32 %v715, %v881
      %v898 = vmul.f32 %v717, %v882
      %v899 = vmul.f32 %v719, %v883
      %v900 = vmul.f32 %v721, %v884
      %v901 = vmul.f32 %v723, %v885
      %v902 = vmul.f32 %v725, %v886
      %v903 = vmul.f32 %v727, %v887
      %904 = vst [vmem:[%s226] sm:$0xff] %v888
      %905 = vst [vmem:[%s226 + $0x8] sm:$0xff] %v889
      %906 = vst [vmem:[%s226 + $0x10] sm:$0xff] %v890
      %907 = vst [vmem:[%s226 + $0x18] sm:$0xff] %v891
      %908 = vst [vmem:[%s226 + $0x20] sm:$0xff] %v892
      %909 = vst [vmem:[%s226 + $0x28] sm:$0xff] %v893
      %910 = vst [vmem:[%s226 + $0x30] sm:$0xff] %v894
      %911 = vst [vmem:[%s226 + $0x38] sm:$0xff] %v895
      %912 = vst [vmem:[%s226 + $0x40] sm:$0xff] %v896
      %913 = vst [vmem:[%s226 + $0x48] sm:$0xff] %v897
      %914 = vst [vmem:[%s226 + $0x50] sm:$0xff] %v898
      %915 = vst [vmem:[%s226 + $0x58] sm:$0xff] %v899
      %916 = vst [vmem:[%s226 + $0x60] sm:$0xff] %v900
      %917 = vst [vmem:[%s226 + $0x68] sm:$0xff] %v901
      %918 = vst [vmem:[%s226 + $0x70] sm:$0xff] %v902
      %919 = vst [vmem:[%s226 + $0x78] sm:$0xff] %v903
      %s920 = smul.u32 16, %s16
      %p921 = scmp.lt.s32.totalorder %s920, 31
      %s922 = scalar_select %p921, %s920, 31
      %s923 = smul.addr %s922, 8
      %s924 = scalar_lea.vmem %s5, %s923
      // Predicated region
      $region41: #{rbm_forward.1} parent=39 // pred_check
        %p925 = pneg %p144
      $region42: #{rbm_forward.1} parent=39 // pred_check_branch
        %927 = sbr.rel (%p925) target = $region44
      $region43: #{rbm_forward.1} parent=39 // pred_region
        %s928 = smul.u32 16, %s16
      $region44: #{rbm_forward.1} parent=39 // pred_fallthru
        _
    $region40: #{rbm_forward.1} parent=5 // pred_fallthru
      _
    %p929 = scmp.le.s32.totalorder 2, %s11
    // Predicated region
    $region45: #{rbm_forward.1} parent=5 // pred_check
      %p930 = pneg %p929
    $region46: #{rbm_forward.1} parent=5 // pred_check_branch
      %932 = sbr.rel (%p930) target = $region48
    $region47: #{rbm_forward.1} parent=5 // pred_region
      %s933 = ssub.s32 %s11, 2
      // Predicated region
      $region49: #{rbm_forward.1} parent=47 // pred_check
        %p934 = pneg %p150
      $region50: #{rbm_forward.1} parent=47 // pred_check_branch
        %936 = sbr.rel (%p934) target = $region52
      $region51: #{rbm_forward.1} parent=47 // pred_region
        %s937 = smul.u32 16, %s17
        %p938 = scmp.lt.s32.totalorder %s937, 31
        %s939 = scalar_select %p938, %s937, 31
        %s940 = smul.addr %s939, 8
        %s941 = scalar_lea.vmem %s5, %s940
      $region52: #{rbm_forward.1} parent=47 // pred_fallthru
        _
    $region48: #{rbm_forward.1} parent=5 // pred_fallthru
      _
  $region6: #{rbm_forward.1} parent=0 // loop_footer
    %s15 = sadd.s32 1, %s11
  $region7: #{rbm_forward.1} parent=0 // loop_footer_branch
    %10 = sbr.rel target = $region3
  $region8: #{rbm_forward.1} parent=0 // loop_exit
    _

</llo_original>
